<compile_context>
chip_gen: v7x
topology: tpu7x:2x2x1
jax: 0.10.0
libtpu: 0.0.40
codegen_flags: <defaults>
</compile_context>

<pallas_src>
import jax
import jax.numpy as jnp
from jax.experimental import pallas as pl
from jax.experimental.pallas import tpu as pltpu


def _conv1x1_add_kernel(x_ref, w_ref, b_ref, v2_ref, other_ref, o_ref):
    # x_ref:     (1, Cin, TS)   activation tile, spatial (H*W) on the lane axis
    # w_ref:     (Cin, Cout, 1) 1x1 conv weight, pre-transposed in the wrapper
    # b_ref:     (Cout, 1)      conv bias (lane-broadcast)
    # v2_ref / other_ref / o_ref: (1, Cout, TS)
    x = x_ref[0]                                   # (Cin, TS)
    w = w_ref[...]                                 # (Cin, Cout, 1)
    cin = x.shape[0]

    # bias + v2 + other, all lane-dense VPU adds
    acc = v2_ref[0] + other_ref[0] + b_ref[...]    # (Cout, TS)

    # 1x1 conv as Cin (=3) broadcast multiply-adds: (Cout,1)*(1,TS) -> (Cout,TS)
    for ci in range(cin):                          # static unroll
        acc = acc + w[ci] * x[ci:ci + 1, :]

    o_ref[0] = acc


def conv1x1_add(x3, w_t, b_col, v23, other3):
    """x3: (N, Cin, S), w_t: (Cin, Cout, 1), b_col: (Cout, 1),
    v23/other3: (N, Cout, S).  Returns (N, Cout, S) float32."""
    N, cin, S = x3.shape
    cout = v23.shape[1]

    # Lane-dense spatial tile: full extent for small S (allowed even when not a
    # multiple of 128); otherwise an 8192-wide multiple-of-128 tile.  Per-step
    # VMEM footprint stays ~1-2 MiB -> fits v7x's smaller VMEM with headroom.
    ts = S if S <= 8192 else 8192
    grid = (N, pl.cdiv(S, ts))

    return pl.pallas_call(
        _conv1x1_add_kernel,
        out_shape=jax.ShapeDtypeStruct((N, cout, S), jnp.float32),
        grid_spec=pltpu.PrefetchScalarGridSpec(
            num_scalar_prefetch=0,
            grid=grid,
            in_specs=[
                pl.BlockSpec((1, cin, ts), lambda n, s: (n, 0, s)),
                pl.BlockSpec((cin, cout, 1), lambda n, s: (0, 0, 0)),
                pl.BlockSpec((cout, 1), lambda n, s: (0, 0)),
                pl.BlockSpec((1, cout, ts), lambda n, s: (n, 0, s)),
                pl.BlockSpec((1, cout, ts), lambda n, s: (n, 0, s)),
            ],
            out_specs=pl.BlockSpec((1, cout, ts), lambda n, s: (n, 0, s)),
        ),
        compiler_params=pltpu.CompilerParams(
            dimension_semantics=("parallel", "parallel")),
    )(x3, w_t, b_col, v23, other3)


def model_forward(x1, v2, weight, bias, other=None, *, rng_key=None):
    """x1: (N, 3, H, W), v2: (N, 7, H, W), weight: (Cout, Cin, 1, 1), bias: (Cout,).
    Returns v2 + conv1x1(x1) + other, shape (N, 7, H, W)."""
    N, cin, H, W = x1.shape
    cout = weight.shape[0]

    if other is None:
        # PyTorch path draws torch.randn(v1.shape); reproduce deterministically
        # (distribution-equivalent, not bit-exact).
        if rng_key is None:
            rng_key = jax.random.PRNGKey(42)
        other = jax.random.normal(rng_key, (N, cout, H, W), dtype=jnp.float32)

    S = H * W
    # Pure reshapes on contiguous NCHW — no transpose, no extra HBM pass.
    x3 = x1.reshape(N, cin, S).astype(jnp.float32)
    v23 = v2.reshape(N, cout, S).astype(jnp.float32)
    other3 = other.reshape(N, cout, S).astype(jnp.float32)

    w_t = weight[:, :, 0, 0].T.reshape(cin, cout, 1).astype(jnp.float32)  # (Cin, Cout, 1)
    b_col = bias.reshape(cout, 1).astype(jnp.float32)                     # (Cout, 1)

    out3 = conv1x1_add(x3, w_t, b_col, v23, other3)
    return out3.reshape(N, cout, H, W)


if __name__ == "__main__":
    key = jax.random.PRNGKey(0)
    k_x, k_v2, k_w, k_b, k_other = jax.random.split(key, 5)

    N, Cin, Cout, H, W = 1, 3, 7, 20, 20

    x1 = jax.random.normal(k_x, (N, Cin, H, W), dtype=jnp.float32)
    v2 = jax.random.normal(k_v2, (N, Cout, H, W), dtype=jnp.float32)

    # Deterministic conv parameters (Conv2d(3, 7, 1) -> weight (7,3,1,1), bias (7,))
    weight = jax.random.normal(k_w, (Cout, Cin, 1, 1), dtype=jnp.float32) * 0.1
    bias = jax.random.normal(k_b, (Cout,), dtype=jnp.float32) * 0.1

    out = model_forward(x1, v2, weight, bias, other=None, rng_key=k_other)
    out = jax.block_until_ready(out)

    # Reference in plain JAX to sanity-check the kernel.
    other_ref = jax.random.normal(k_other, (N, Cout, H, W), dtype=jnp.float32)
    w2d = weight[:, :, 0, 0]                                   # (Cout, Cin)
    conv_ref = jnp.einsum("nchw,oc->nohw", x1, w2d) + bias.reshape(1, Cout, 1, 1)
    ref = v2 + conv_ref + other_ref
    assert out.shape == (N, Cout, H, W)
    assert jnp.allclose(out, ref, atol=1e-4, rtol=1e-4)

    print("KERNEL_OK")
</pallas_src>

<mosaic_0001>
module attributes {stable_mosaic.version = 11 : i64} {
  func.func @_conv1x1_add_kernel(%arg0: i32, %arg1: i32, %arg2: memref<1x3x400xf32, #tpu.memory_space<vmem>>, %arg3: memref<3x7x1xf32, #tpu.memory_space<vmem>>, %arg4: memref<7x1xf32, #tpu.memory_space<vmem>>, %arg5: memref<1x7x400xf32, #tpu.memory_space<vmem>>, %arg6: memref<1x7x400xf32, #tpu.memory_space<vmem>>, %arg7: memref<1x7x400xf32, #tpu.memory_space<vmem>>) attributes {dimension_semantics = [#tpu.dimension_semantics<parallel>, #tpu.dimension_semantics<parallel>], iteration_bounds = array<i64: 1, 1>, scalar_prefetch = 0 : i64, scratch_operands = 0 : i64, tpu.core_type = #tpu.core_type<tc>, window_params = [{transform_indices = @transform_0, window_bounds = array<i64: 1, 3, 400>}, {pipeline_mode = #tpu.pipeline_mode<synchronous>, transform_indices = @transform_1, window_bounds = array<i64: 3, 7, 1>}, {pipeline_mode = #tpu.pipeline_mode<synchronous>, transform_indices = @transform_2, window_bounds = array<i64: 7, 1>}, {transform_indices = @transform_3, window_bounds = array<i64: 1, 7, 400>}, {transform_indices = @transform_4, window_bounds = array<i64: 1, 7, 400>}, {transform_indices = @transform_5, window_bounds = array<i64: 1, 7, 400>}]} {
    %c0 = arith.constant 0 : index
    %c0_0 = arith.constant 0 : index
    %c0_1 = arith.constant 0 : index
    %0 = vector.load %arg2[%c0, %c0_0, %c0_1] : memref<1x3x400xf32, #tpu.memory_space<vmem>>, vector<1x3x400xf32>
    %1 = vector.shape_cast %0 : vector<1x3x400xf32> to vector<3x400xf32>
    %c0_2 = arith.constant 0 : index
    %c0_3 = arith.constant 0 : index
    %c0_4 = arith.constant 0 : index
    %2 = vector.load %arg3[%c0_2, %c0_3, %c0_4] : memref<3x7x1xf32, #tpu.memory_space<vmem>>, vector<3x7x1xf32>
    %c0_5 = arith.constant 0 : index
    %c0_6 = arith.constant 0 : index
    %c0_7 = arith.constant 0 : index
    %3 = vector.load %arg5[%c0_5, %c0_6, %c0_7] : memref<1x7x400xf32, #tpu.memory_space<vmem>>, vector<1x7x400xf32>
    %4 = vector.shape_cast %3 : vector<1x7x400xf32> to vector<7x400xf32>
    %c0_8 = arith.constant 0 : index
    %c0_9 = arith.constant 0 : index
    %c0_10 = arith.constant 0 : index
    %5 = vector.load %arg6[%c0_8, %c0_9, %c0_10] : memref<1x7x400xf32, #tpu.memory_space<vmem>>, vector<1x7x400xf32>
    %6 = vector.shape_cast %5 : vector<1x7x400xf32> to vector<7x400xf32>
    %7 = arith.addf %4, %6 : vector<7x400xf32>
    %c0_11 = arith.constant 0 : index
    %c0_12 = arith.constant 0 : index
    %8 = vector.load %arg4[%c0_11, %c0_12] : memref<7x1xf32, #tpu.memory_space<vmem>>, vector<7x1xf32>
    %9 = vector.broadcast %8 : vector<7x1xf32> to vector<7x400xf32>
    %10 = arith.addf %7, %9 : vector<7x400xf32>
    %11 = vector.extract_strided_slice %2 {offsets = [0, 0, 0], sizes = [1, 7, 1], strides = [1, 1, 1]} : vector<3x7x1xf32> to vector<1x7x1xf32>
    %12 = vector.shape_cast %11 : vector<1x7x1xf32> to vector<7x1xf32>
    %13 = vector.extract_strided_slice %1 {offsets = [0, 0], sizes = [1, 400], strides = [1, 1]} : vector<3x400xf32> to vector<1x400xf32>
    %14 = vector.broadcast %12 : vector<7x1xf32> to vector<7x400xf32>
    %15 = vector.broadcast %13 : vector<1x400xf32> to vector<7x400xf32>
    %16 = arith.mulf %14, %15 : vector<7x400xf32>
    %17 = arith.addf %10, %16 : vector<7x400xf32>
    %18 = vector.extract_strided_slice %2 {offsets = [1, 0, 0], sizes = [1, 7, 1], strides = [1, 1, 1]} : vector<3x7x1xf32> to vector<1x7x1xf32>
    %19 = vector.shape_cast %18 : vector<1x7x1xf32> to vector<7x1xf32>
    %20 = vector.extract_strided_slice %1 {offsets = [1, 0], sizes = [1, 400], strides = [1, 1]} : vector<3x400xf32> to vector<1x400xf32>
    %21 = vector.broadcast %19 : vector<7x1xf32> to vector<7x400xf32>
    %22 = vector.broadcast %20 : vector<1x400xf32> to vector<7x400xf32>
    %23 = arith.mulf %21, %22 : vector<7x400xf32>
    %24 = arith.addf %17, %23 : vector<7x400xf32>
    %25 = vector.extract_strided_slice %2 {offsets = [2, 0, 0], sizes = [1, 7, 1], strides = [1, 1, 1]} : vector<3x7x1xf32> to vector<1x7x1xf32>
    %26 = vector.shape_cast %25 : vector<1x7x1xf32> to vector<7x1xf32>
    %27 = vector.extract_strided_slice %1 {offsets = [2, 0], sizes = [1, 400], strides = [1, 1]} : vector<3x400xf32> to vector<1x400xf32>
    %28 = vector.broadcast %26 : vector<7x1xf32> to vector<7x400xf32>
    %29 = vector.broadcast %27 : vector<1x400xf32> to vector<7x400xf32>
    %30 = arith.mulf %28, %29 : vector<7x400xf32>
    %31 = arith.addf %24, %30 : vector<7x400xf32>
    %c0_13 = arith.constant 0 : index
    %c0_14 = arith.constant 0 : index
    %c0_15 = arith.constant 0 : index
    %32 = vector.load %arg7[%c0_13, %c0_14, %c0_15] : memref<1x7x400xf32, #tpu.memory_space<vmem>>, vector<1x7x400xf32>
    %33 = vector.shape_cast %32 : vector<1x7x400xf32> to vector<7x400xf32>
    %34 = vector.shape_cast %31 : vector<7x400xf32> to vector<1x7x400xf32>
    tpu.vector_store %arg7[%c0_13, %c0_14, %c0_15], %34 {strides = array<i32>} : memref<1x7x400xf32, #tpu.memory_space<vmem>>, vector<1x7x400xf32>,
    return
  }
  func.func @transform_0(%arg0: i32, %arg1: i32) -> (i32, i32, i32) {
    %c0_i32 = arith.constant 0 : i32
    %c0_i32_0 = arith.constant 0 : i32
    return %arg0, %c0_i32, %arg1 : i32, i32, i32
  }
  func.func @transform_1(%arg0: i32, %arg1: i32) -> (i32, i32, i32) {
    %c0_i32 = arith.constant 0 : i32
    %c0_i32_0 = arith.constant 0 : i32
    %c0_i32_1 = arith.constant 0 : i32
    %c0_i32_2 = arith.constant 0 : i32
    return %c0_i32, %c0_i32_0, %c0_i32_1 : i32, i32, i32
  }
  func.func @transform_2(%arg0: i32, %arg1: i32) -> (i32, i32) {
    %c0_i32 = arith.constant 0 : i32
    %c0_i32_0 = arith.constant 0 : i32
    %c0_i32_1 = arith.constant 0 : i32
    return %c0_i32, %c0_i32_0 : i32, i32
  }
  func.func @transform_3(%arg0: i32, %arg1: i32) -> (i32, i32, i32) {
    %c0_i32 = arith.constant 0 : i32
    %c0_i32_0 = arith.constant 0 : i32
    return %arg0, %c0_i32, %arg1 : i32, i32, i32
  }
  func.func @transform_4(%arg0: i32, %arg1: i32) -> (i32, i32, i32) {
    %c0_i32 = arith.constant 0 : i32
    %c0_i32_0 = arith.constant 0 : i32
    return %arg0, %c0_i32, %arg1 : i32, i32, i32
  }
  func.func @transform_5(%arg0: i32, %arg1: i32) -> (i32, i32, i32) {
    %c0_i32 = arith.constant 0 : i32
    %c0_i32_0 = arith.constant 0 : i32
    return %arg0, %c0_i32, %arg1 : i32, i32, i32
  }
}

</mosaic_0001>

<llo_original>
// kernel: tpu_custom_call.1
$region0: #{tpu_custom_call.1}
  #allocation0 [shape = 'u32[]', space=smem, size = 0x4, offset = 0x4, fixed_abs, tag = 'smem constant byte address 0x4 - core index']
  #allocation1 [shape = 'u32[144,128]{1,0:T(1,128)}', space=vmem, size = 0x12000, scoped, tag = 'internal scratch']
  %s0 = inlined_call_operand.vmem [shape: f32[1,3,400], index: 0, kind: input, shape index: {}]
  %s1 = inlined_call_operand.vmem [shape: f32[3,7,1], index: 1, kind: input, shape index: {}]
  %s2 = inlined_call_operand.vmem [shape: f32[7,1], index: 2, kind: input, shape index: {}]
  %s3 = inlined_call_operand.vmem [shape: f32[1,7,400], index: 3, kind: input, shape index: {}]
  %s4 = inlined_call_operand.vmem [shape: f32[1,7,400], index: 4, kind: input, shape index: {}]
  %s5 = inlined_call_operand.vmem [shape: f32[1,7,400], index: 5, kind: output, shape index: {}]
  %s6 = sld [smem:[#allocation0]]
  $region30: #{tpu_custom_call.1} parent=0
    _
  %s8 = ssub.s32 1, %s6
  %s9 = scalar_select 0, %s8, %s6
  // Predicated region
  $region2: #{tpu_custom_call.1} parent=0 // pred_check
    _
  $region3: #{tpu_custom_call.1} parent=0 // pred_check_branch
    %11 = sbr.rel (0) target = $region5
  $region4: #{tpu_custom_call.1} parent=0 // pred_region
    _
  $region5: #{tpu_custom_call.1} parent=0 // pred_fallthru
    _
  // Predicated region
  $region6: #{tpu_custom_call.1} parent=0 // pred_check
    _
  $region7: #{tpu_custom_call.1} parent=0 // pred_check_branch
    %13 = sbr.rel (0) target = $region9
  $region8: #{tpu_custom_call.1} parent=0 // pred_region
    _
  $region9: #{tpu_custom_call.1} parent=0 // pred_fallthru
    _
  // Predicated region
  $region10: #{tpu_custom_call.1} parent=0 // pred_check
    _
  $region11: #{tpu_custom_call.1} parent=0 // pred_check_branch
    %15 = sbr.rel (0) target = $region13
  $region12: #{tpu_custom_call.1} parent=0 // pred_region
    _
  $region13: #{tpu_custom_call.1} parent=0 // pred_fallthru
    _
  // Predicated region
  $region14: #{tpu_custom_call.1} parent=0 // pred_check
    _
  $region15: #{tpu_custom_call.1} parent=0 // pred_check_branch
    %17 = sbr.rel (0) target = $region17
  $region16: #{tpu_custom_call.1} parent=0 // pred_region
    _
  $region17: #{tpu_custom_call.1} parent=0 // pred_fallthru
    _
  // Predicated region
  $region18: #{tpu_custom_call.1} parent=0 // pred_check
    _
  $region19: #{tpu_custom_call.1} parent=0 // pred_check_branch
    %19 = sbr.rel (0) target = $region21
  $region20: #{tpu_custom_call.1} parent=0 // pred_region
    _
  $region21: #{tpu_custom_call.1} parent=0 // pred_fallthru
    _
  %v20 = vld [vmem:[%s0] sm:$0x77]
  %v21 = vld [vmem:[%s0 + $0x8] sm:$0x77]
  %v22 = vld [vmem:[%s1] sm:$0x7f]
  %v23 = vld [vmem:[%s1 + $0x8] sm:$0x7f]
  %v24 = vld [vmem:[%s1 + $0x10] sm:$0x7f]
  %v25 = vld [vmem:[%s3] sm:$0x7f]
  %v26 = vld [vmem:[%s3 + $0x8] sm:$0x7f]
  %v27 = vld [vmem:[%s3 + $0x10] sm:$0x7f]
  %v28 = vld [vmem:[%s3 + $0x18] sm:$0x7f]
  %v29 = vld [vmem:[%s4] sm:$0x7f]
  %v30 = vld [vmem:[%s4 + $0x8] sm:$0x7f]
  %v31 = vld [vmem:[%s4 + $0x10] sm:$0x7f]
  %v32 = vld [vmem:[%s4 + $0x18] sm:$0x7f]
  %v33 = vadd.f32 %v25, %v29
  %v34 = vadd.f32 %v26, %v30
  %v35 = vadd.f32 %v27, %v31
  %v36 = vadd.f32 %v28, %v32
  %v37 = vld [vmem:[%s2] sm:$0x7f]
  %39 = vset.pattern.permute.xlu0 0
  %40 = vperm.xlu0 %39, %v37
  %v41 = vpop.permute.xlu0 %40
  %v43 = vadd.f32 %v33, %v41
  %v44 = vadd.f32 %v34, %v41
  %v45 = vadd.f32 %v35, %v41
  %v46 = vadd.f32 %v36, %v41
  %48 = vset.pattern.permute.xlu0 0
  %49 = vperm.xlu0 %48, %v22
  %v50 = vpop.permute.xlu0 %49
  %v54 = vlaneseq
  %v55 = vshrl.u32 %v54, 7
  %v56 = vsub.s32 0, %v55
  %v57 = vrot.slane %v20, %v56
  %v58 = vlaneseq
  %v59 = vshrl.u32 %v58, 7
  %v60 = vsub.s32 4, %v59
  %v61 = vrot.slane %v20, %v60
  %v62 = vlaneseq
  %v63 = vshrl.u32 %v62, 7
  %v64 = vsub.s32 0, %v63
  %v65 = vrot.slane %v21, %v64
  %v66 = vlaneseq
  %v67 = vshrl.u32 %v66, 7
  %v68 = vsub.s32 4, %v67
  %v69 = vrot.slane %v21, %v68
  %v74 = vlaneseq
  %v75 = vshrl.u32 %v74, 7
  %v76 = vsub.s32 0, %v75
  %v77 = vrot.slane %v57, %v76
  %v78 = vlaneseq
  %v79 = vshrl.u32 %v78, 7
  %v80 = vsub.s32 0, %v79
  %v81 = vrot.slane %v61, %v80
  %v82 = vlaneseq
  %v83 = vshrl.u32 %v82, 7
  %v84 = vsub.s32 0, %v83
  %v85 = vrot.slane %v65, %v84
  %v86 = vlaneseq
  %v87 = vshrl.u32 %v86, 7
  %v88 = vsub.s32 0, %v87
  %v89 = vrot.slane %v69, %v88
  %v90 = vmul.f32 %v50, %v77
  %v91 = vmul.f32 %v50, %v81
  %v92 = vmul.f32 %v50, %v85
  %v93 = vmul.f32 %v50, %v89
  %v94 = vadd.f32 %v43, %v90
  %v95 = vadd.f32 %v44, %v91
  %v96 = vadd.f32 %v45, %v92
  %v97 = vadd.f32 %v46, %v93
  %99 = vset.pattern.permute.xlu0 0
  %100 = vperm.xlu0 %99, %v23
  %v101 = vpop.permute.xlu0 %100
  %v103 = vlaneseq
  %v104 = vshrl.u32 %v103, 7
  %v105 = vsub.s32 1, %v104
  %v106 = vrot.slane %v20, %v105
  %v107 = vlaneseq
  %v108 = vshrl.u32 %v107, 7
  %v109 = vsub.s32 5, %v108
  %v110 = vrot.slane %v20, %v109
  %v111 = vlaneseq
  %v112 = vshrl.u32 %v111, 7
  %v113 = vsub.s32 1, %v112
  %v114 = vrot.slane %v21, %v113
  %v115 = vlaneseq
  %v116 = vshrl.u32 %v115, 7
  %v117 = vsub.s32 5, %v116
  %v118 = vrot.slane %v21, %v117
  %v123 = vlaneseq
  %v124 = vshrl.u32 %v123, 7
  %v125 = vsub.s32 1, %v124
  %v126 = vrot.slane %v106, %v125
  %v127 = vlaneseq
  %v128 = vshrl.u32 %v127, 7
  %v129 = vsub.s32 1, %v128
  %v130 = vrot.slane %v110, %v129
  %v131 = vlaneseq
  %v132 = vshrl.u32 %v131, 7
  %v133 = vsub.s32 1, %v132
  %v134 = vrot.slane %v114, %v133
  %v135 = vlaneseq
  %v136 = vshrl.u32 %v135, 7
  %v137 = vsub.s32 1, %v136
  %v138 = vrot.slane %v118, %v137
  %v139 = vmul.f32 %v101, %v126
  %v140 = vmul.f32 %v101, %v130
  %v141 = vmul.f32 %v101, %v134
  %v142 = vmul.f32 %v101, %v138
  %v143 = vadd.f32 %v94, %v139
  %v144 = vadd.f32 %v95, %v140
  %v145 = vadd.f32 %v96, %v141
  %v146 = vadd.f32 %v97, %v142
  %148 = vset.pattern.permute.xlu0 0
  %149 = vperm.xlu0 %148, %v24
  %v150 = vpop.permute.xlu0 %149
  %v152 = vlaneseq
  %v153 = vshrl.u32 %v152, 7
  %v154 = vsub.s32 2, %v153
  %v155 = vrot.slane %v20, %v154
  %v156 = vlaneseq
  %v157 = vshrl.u32 %v156, 7
  %v158 = vsub.s32 6, %v157
  %v159 = vrot.slane %v20, %v158
  %v160 = vlaneseq
  %v161 = vshrl.u32 %v160, 7
  %v162 = vsub.s32 2, %v161
  %v163 = vrot.slane %v21, %v162
  %v164 = vlaneseq
  %v165 = vshrl.u32 %v164, 7
  %v166 = vsub.s32 6, %v165
  %v167 = vrot.slane %v21, %v166
  %v172 = vlaneseq
  %v173 = vshrl.u32 %v172, 7
  %v174 = vsub.s32 2, %v173
  %v175 = vrot.slane %v155, %v174
  %v176 = vlaneseq
  %v177 = vshrl.u32 %v176, 7
  %v178 = vsub.s32 2, %v177
  %v179 = vrot.slane %v159, %v178
  %v180 = vlaneseq
  %v181 = vshrl.u32 %v180, 7
  %v182 = vsub.s32 2, %v181
  %v183 = vrot.slane %v163, %v182
  %v184 = vlaneseq
  %v185 = vshrl.u32 %v184, 7
  %v186 = vsub.s32 2, %v185
  %v187 = vrot.slane %v167, %v186
  %v188 = vmul.f32 %v150, %v175
  %v189 = vmul.f32 %v150, %v179
  %v190 = vmul.f32 %v150, %v183
  %v191 = vmul.f32 %v150, %v187
  %v192 = vadd.f32 %v143, %v188
  %v193 = vadd.f32 %v144, %v189
  %v194 = vadd.f32 %v145, %v190
  %v195 = vadd.f32 %v146, %v191
  %196 = vst [vmem:[%s5] sm:$0x7f] %v192
  %197 = vst [vmem:[%s5 + $0x8] sm:$0x7f] %v193
  %198 = vst [vmem:[%s5 + $0x10] sm:$0x7f] %v194
  %vm199 = vcmask 129024
  %200 = vst.msk [vmem:[%s5 + $0x18] sm:$0x7f] %vm199, %v195
  // Predicated region
  $region22: #{tpu_custom_call.1} parent=0 // pred_check
    _
  $region23: #{tpu_custom_call.1} parent=0 // pred_check_branch
    %202 = sbr.rel (0) target = $region25
  $region24: #{tpu_custom_call.1} parent=0 // pred_region
    _
  $region25: #{tpu_custom_call.1} parent=0 // pred_fallthru
    _
  // Predicated region
  $region26: #{tpu_custom_call.1} parent=0 // pred_check
    _
  $region27: #{tpu_custom_call.1} parent=0 // pred_check_branch
    %204 = sbr.rel (0) target = $region29
  $region28: #{tpu_custom_call.1} parent=0 // pred_region
    _
  $region29: #{tpu_custom_call.1} parent=0 // pred_fallthru
    _

</llo_original>
